<compile_context>
chip_gen: v7x
topology: tpu7x:2x2x1
jax: 0.10.0
libtpu: 0.0.40
codegen_flags: <defaults>
</compile_context>

<pallas_src>
import functools

import jax
import jax.numpy as jnp
from jax.experimental import pallas as pl
from jax.experimental.pallas import tpu as pltpu


# Set to jnp.bfloat16 on v6e/v7x for 2x MXU throughput and half the operand DMA
# bytes (accumulation stays f32). Default f32 preserves the module's numerics.
MATMUL_DTYPE = jnp.float32


# ----------------------------------------------------------------------------
# Pallas kernels. One grid step = one batch element x one spatial tile.
#   y = W_folded @ patches^T  (single MXU matmul)  + bn_shift
#   y = LeakyReLU(y)          [+ residual on the last layer]
# All blocks are lane-dense: last dim is HW_tile (multiple of 128 or full extent).
# ----------------------------------------------------------------------------
def _odconv_layer_kernel(p_ref, w_ref, shift_ref, o_ref):
    # p_ref    : (K*K*C_in, T)   transposed im2col patches for this (batch, tile)
    # w_ref    : (C_out, K*K*C_in) per-batch weight with ch-att / filt-att / BN-scale folded in
    # shift_ref: (C_out, 1)      BatchNorm shift (beta - mean * scale)
    # o_ref    : (C_out, T)
    y = jnp.dot(w_ref[...], p_ref[...], preferred_element_type=jnp.float32)
    y = y + shift_ref[...].astype(jnp.float32)          # broadcast over lanes
    y = jnp.where(y >= 0, y, 0.01 * y)                  # LeakyReLU(0.01)
    o_ref[...] = y.astype(o_ref.dtype)


def _odconv_layer_kernel_res(p_ref, w_ref, shift_ref, res_ref, o_ref):
    # Same as above, plus the block-level residual (last layer only).
    y = jnp.dot(w_ref[...], p_ref[...], preferred_element_type=jnp.float32)
    y = y + shift_ref[...].astype(jnp.float32)
    y = jnp.where(y >= 0, y, 0.01 * y)
    y = y + res_ref[...].astype(jnp.float32)
    o_ref[...] = y.astype(o_ref.dtype)


def _pick_spatial_tile(hw, max_tile):
    """Largest tile <= max_tile that is a multiple of 128 and divides hw (else hw)."""
    if hw <= max_tile:
        return hw
    t = (max_tile // 128) * 128
    while t >= 128:
        if hw % t == 0:
            return t
        t -= 128
    return hw


# ----------------------------------------------------------------------------
# One ODConvLayer forward (ODConv2d -> BN(eval) -> LeakyReLU), residual optional.
# Input / output layout: NCHW (matches PyTorch); internally everything is presented
# to the kernel as lane-dense (C_out, H*W) / (K*K*C_in, H*W) slabs.
# ----------------------------------------------------------------------------
def odconv_layer_pallas(x_nchw, params, residual=None, *, spatial_tile=1024,
                        matmul_dtype=MATMUL_DTYPE):
    B, C_in, H, W = x_nchw.shape
    K = params["ksize"]
    C_out = params["weight"].shape[1]
    pad = K // 2
    HW = H * W
    KKC = K * K * C_in

    xf = x_nchw.astype(jnp.float32)

    # ---------------- attention branch (tiny; plain JAX glue) ----------------
    pooled = jnp.mean(xf, axis=(2, 3))                                    # (B, C_in)
    a = pooled @ params["fc_w"].T                                         # (B, A)
    a = ((a - params["bn_rm"]) / jnp.sqrt(params["bn_rv"] + 1e-5)
         * params["bn_g"] + params["bn_b"])
    a = jnp.maximum(a, 0.0)                                               # ReLU
    # temperature == 1
    ch_att = jax.nn.sigmoid(a @ params["ch_w"].T + params["ch_b"])        # (B, C_in)
    filt_att = jax.nn.sigmoid(a @ params["filt_w"].T + params["filt_b"])  # (B, C_out)
    sp_att = jax.nn.sigmoid(a @ params["sp_w"].T + params["sp_b"])        # (B, K*K)
    sp_att = sp_att.reshape(B, K, K)
    kn_att = jax.nn.softmax(a @ params["kn_w"].T + params["kn_b"], axis=1)  # (B, Kn)

    # -------- fold every multiplicative factor into the per-batch weight --------
    # conv(x * ch_att, W) * filt_att * bn_scale == conv(x, W * ch_att * filt_att * bn_scale)
    bn_scale = params["out_bn_g"] / jnp.sqrt(params["out_bn_rv"] + 1e-5)   # (C_out,)
    bn_shift = params["out_bn_b"] - params["out_bn_rm"] * bn_scale         # (C_out,)
    out_scale = filt_att * bn_scale[None, :]                               # (B, C_out)

    # weight bank: (Kn, C_out, C_in, K, K) -> folded (B, C_out, K*K*C_in) slab
    w_t = jnp.einsum("bn,bst,noist,bi,bo->bosti",
                     kn_att, sp_att, params["weight"], ch_att, out_scale)
    w_t = w_t.reshape(B, C_out, KKC).astype(matmul_dtype)

    # -------- transposed im2col: (B, K*K*C_in, H*W); lane dim = H*W --------
    x_pad = jnp.pad(xf, ((0, 0), (0, 0), (pad, pad), (pad, pad)))
    taps = [x_pad[:, :, dy:dy + H, dx:dx + W]
            for dy in range(K) for dx in range(K)]
    patches_t = jnp.concatenate(taps, axis=1).reshape(B, KKC, HW)
    patches_t = patches_t.astype(matmul_dtype)

    shift = bn_shift.reshape(C_out, 1).astype(jnp.float32)

    T = _pick_spatial_tile(HW, spatial_tile)
    grid = (B, HW // T)

    in_specs = [
        pl.BlockSpec((None, KKC, T), lambda b, t: (b, 0, t)),        # patches^T
        pl.BlockSpec((None, C_out, KKC), lambda b, t: (b, 0, 0)),    # folded weight
        pl.BlockSpec((C_out, 1), lambda b, t: (0, 0)),               # bn shift
    ]
    operands = [patches_t, w_t, shift]

    if residual is not None:
        in_specs.append(pl.BlockSpec((None, C_out, T), lambda b, t: (b, 0, t)))
        operands.append(residual.reshape(B, C_out, HW))
        kernel = _odconv_layer_kernel_res
    else:
        kernel = _odconv_layer_kernel

    out = pl.pallas_call(
        kernel,
        out_shape=jax.ShapeDtypeStruct((B, C_out, HW), x_nchw.dtype),
        grid=grid,
        in_specs=in_specs,
        out_specs=pl.BlockSpec((None, C_out, T), lambda b, t: (b, 0, t)),
        compiler_params=pltpu.CompilerParams(
            dimension_semantics=("parallel", "parallel")),
    )(*operands)
    return out.reshape(B, C_out, H, W)


# ----------------------------------------------------------------------------
# ResidualODConvBlock forward: layers, then add the block input as residual
# (fused into the last layer's kernel — no zero-residual DMA for other layers).
# ----------------------------------------------------------------------------
def residual_odconv_block(x_nchw, layer_params, **kwargs):
    h = x_nchw
    n_layers = len(layer_params)
    for li, p in enumerate(layer_params):
        res = x_nchw if li == n_layers - 1 else None
        h = odconv_layer_pallas(h, p, residual=res, **kwargs)
    return h


# ----------------------------------------------------------------------------
# Deterministic parameter construction (mirrors module __init__ shapes).
# ----------------------------------------------------------------------------
def init_layer_params(key, c_in, c_out, ksize, kernel_num,
                      reduction=0.0625, min_channel=16):
    A = max(int(c_in * reduction), min_channel)  # attention_channel
    ks = jax.random.split(key, 6)
    std_attn = 0.1
    # kaiming_normal_(mode='fan_out', nonlinearity='relu') for the main weight
    std_w = (2.0 / (c_out * ksize * ksize)) ** 0.5
    p = {
        "ksize": ksize,
        # Attention: fc (no bias) + BatchNorm (inference mode stats)
        "fc_w": jax.random.normal(ks[0], (A, c_in), jnp.float32) * std_attn,
        "bn_g": jnp.ones((A,), jnp.float32),
        "bn_b": jnp.zeros((A,), jnp.float32),
        "bn_rm": jnp.zeros((A,), jnp.float32),
        "bn_rv": jnp.ones((A,), jnp.float32),
        # channel / filter / spatial / kernel attention heads (1x1 convs, bias init 0)
        "ch_w": jax.random.normal(ks[1], (c_in, A), jnp.float32) * std_attn,
        "ch_b": jnp.zeros((c_in,), jnp.float32),
        "filt_w": jax.random.normal(ks[2], (c_out, A), jnp.float32) * std_attn,
        "filt_b": jnp.zeros((c_out,), jnp.float32),
        "sp_w": jax.random.normal(ks[3], (ksize * ksize, A), jnp.float32) * std_attn,
        "sp_b": jnp.zeros((ksize * ksize,), jnp.float32),
        "kn_w": jax.random.normal(ks[4], (kernel_num, A), jnp.float32) * std_attn,
        "kn_b": jnp.zeros((kernel_num,), jnp.float32),
        # ODConv weight bank: (kernel_num, out, in, k, k)
        "weight": jax.random.normal(
            ks[5], (kernel_num, c_out, c_in, ksize, ksize), jnp.float32) * std_w,
        # Layer output BatchNorm2d(out_channels), inference-mode stats
        "out_bn_g": jnp.ones((c_out,), jnp.float32),
        "out_bn_b": jnp.zeros((c_out,), jnp.float32),
        "out_bn_rm": jnp.zeros((c_out,), jnp.float32),
        "out_bn_rv": jnp.ones((c_out,), jnp.float32),
    }
    return p


if __name__ == "__main__":
    key = jax.random.PRNGKey(0)
    B, C, H, W = 2, 4, 16, 16
    kernel_size = 3
    convolution_kernels = 4
    layers_per_block = 2

    kx, k1, k2 = jax.random.split(key, 3)
    x = jax.random.normal(kx, (B, C, H, W), jnp.float32)

    layer_keys = [k1, k2][:layers_per_block]
    layer_params = [
        init_layer_params(lk, C, C, kernel_size, convolution_kernels)
        for lk in layer_keys
    ]

    out = residual_odconv_block(x, layer_params)
    out = jax.block_until_ready(out)
    assert out.shape == (B, C, H, W), out.shape
    assert jnp.all(jnp.isfinite(out))
    print("KERNEL_OK")
</pallas_src>

<mosaic_0001>
module attributes {stable_mosaic.version = 11 : i64} {
  func.func @_odconv_layer_kernel(%arg0: i32, %arg1: i32, %arg2: memref<1x36x256xf32, #tpu.memory_space<vmem>>, %arg3: memref<1x4x36xf32, #tpu.memory_space<vmem>>, %arg4: memref<4x1xf32, #tpu.memory_space<vmem>>, %arg5: memref<1x4x256xf32, #tpu.memory_space<vmem>>) attributes {dimension_semantics = [#tpu.dimension_semantics<parallel>, #tpu.dimension_semantics<parallel>], iteration_bounds = array<i64: 2, 1>, scalar_prefetch = 0 : i64, scratch_operands = 0 : i64, tpu.core_type = #tpu.core_type<tc>, window_params = [{transform_indices = @transform_0, window_bounds = array<i64: 1, 36, 256>}, {transform_indices = @transform_1, window_bounds = array<i64: 1, 4, 36>}, {pipeline_mode = #tpu.pipeline_mode<synchronous>, transform_indices = @transform_2, window_bounds = array<i64: 4, 1>}, {transform_indices = @transform_3, window_bounds = array<i64: 1, 4, 256>}]} {
    %c0 = arith.constant 0 : index
    %c0_0 = arith.constant 0 : index
    %c0_1 = arith.constant 0 : index
    %0 = vector.load %arg3[%c0, %c0_0, %c0_1] : memref<1x4x36xf32, #tpu.memory_space<vmem>>, vector<1x4x36xf32>
    %1 = vector.shape_cast %0 : vector<1x4x36xf32> to vector<4x36xf32>
    %c0_2 = arith.constant 0 : index
    %c0_3 = arith.constant 0 : index
    %c0_4 = arith.constant 0 : index
    %2 = vector.load %arg2[%c0_2, %c0_3, %c0_4] : memref<1x36x256xf32, #tpu.memory_space<vmem>>, vector<1x36x256xf32>
    %3 = vector.shape_cast %2 : vector<1x36x256xf32> to vector<36x256xf32>
    %cst = arith.constant dense<0.000000e+00> : vector<4x256xf32>
    %4 = tpu.matmul %1, %3, %cst {dimension_numbers = #tpu.dot_dimension_numbers<[1], [0], [0], [1], [0, 0, 1, 1], [], []>} : vector<4x36xf32>, vector<36x256xf32>, vector<4x256xf32> -> vector<4x256xf32>
    %c0_5 = arith.constant 0 : index
    %c0_6 = arith.constant 0 : index
    %5 = vector.load %arg4[%c0_5, %c0_6] : memref<4x1xf32, #tpu.memory_space<vmem>>, vector<4x1xf32>
    %6 = vector.broadcast %5 : vector<4x1xf32> to vector<4x256xf32>
    %7 = arith.addf %4, %6 : vector<4x256xf32>
    %cst_7 = arith.constant 0.000000e+00 : f32
    %8 = vector.broadcast %cst_7 : f32 to vector<4x256xf32>
    %9 = arith.cmpf oge, %7, %8 : vector<4x256xf32>
    %cst_8 = arith.constant 0.00999999977 : f32
    %10 = vector.broadcast %cst_8 : f32 to vector<4x256xf32>
    %11 = arith.mulf %10, %7 : vector<4x256xf32>
    %12 = arith.select %9, %7, %11 : vector<4x256xi1>, vector<4x256xf32>
    %c0_9 = arith.constant 0 : index
    %c0_10 = arith.constant 0 : index
    %c0_11 = arith.constant 0 : index
    %13 = vector.load %arg5[%c0_9, %c0_10, %c0_11] : memref<1x4x256xf32, #tpu.memory_space<vmem>>, vector<1x4x256xf32>
    %14 = vector.shape_cast %13 : vector<1x4x256xf32> to vector<4x256xf32>
    %15 = vector.shape_cast %12 : vector<4x256xf32> to vector<1x4x256xf32>
    tpu.vector_store %arg5[%c0_9, %c0_10, %c0_11], %15 {strides = array<i32>} : memref<1x4x256xf32, #tpu.memory_space<vmem>>, vector<1x4x256xf32>,
    return
  }
  func.func @transform_0(%arg0: i32, %arg1: i32) -> (i32, i32, i32) {
    %c0_i32 = arith.constant 0 : i32
    %c0_i32_0 = arith.constant 0 : i32
    return %arg0, %c0_i32, %arg1 : i32, i32, i32
  }
  func.func @transform_1(%arg0: i32, %arg1: i32) -> (i32, i32, i32) {
    %c0_i32 = arith.constant 0 : i32
    %c0_i32_0 = arith.constant 0 : i32
    %c0_i32_1 = arith.constant 0 : i32
    return %arg0, %c0_i32, %c0_i32_0 : i32, i32, i32
  }
  func.func @transform_2(%arg0: i32, %arg1: i32) -> (i32, i32) {
    %c0_i32 = arith.constant 0 : i32
    %c0_i32_0 = arith.constant 0 : i32
    %c0_i32_1 = arith.constant 0 : i32
    return %c0_i32, %c0_i32_0 : i32, i32
  }
  func.func @transform_3(%arg0: i32, %arg1: i32) -> (i32, i32, i32) {
    %c0_i32 = arith.constant 0 : i32
    %c0_i32_0 = arith.constant 0 : i32
    return %arg0, %c0_i32, %arg1 : i32, i32, i32
  }
}

</mosaic_0001>

<llo_original>
// kernel: tpu_custom_call.1
$region0: #{tpu_custom_call.1}
  #allocation0 [shape = 'u32[]', space=smem, size = 0x4, offset = 0x4, fixed_abs, tag = 'smem constant byte address 0x4 - core index']
  #allocation1 [shape = 'u32[144,128]{1,0:T(1,128)}', space=vmem, size = 0x12000, scoped, tag = 'internal scratch']
  %s0 = inlined_call_operand.vmem [shape: f32[2,36,256], index: 0, kind: input, shape index: {}]
  %s1 = inlined_call_operand.vmem [shape: f32[2,4,36], index: 1, kind: input, shape index: {}]
  %s2 = inlined_call_operand.vmem [shape: f32[4,1], index: 2, kind: input, shape index: {}]
  %s3 = inlined_call_operand.hbm [shape: f32[2,4,256], index: 3, kind: output, shape index: {}]
  %s4 = sld [smem:[#allocation0]]
  $region45: #{tpu_custom_call.1} parent=0
    _
  %s6 = ssub.s32 1, %s4
  %s7 = scalar_select 0, %s6, %s4
  $region1: #{tpu_custom_call.1} parent=0
    #allocation2 [shape = 'u8[8192]{0}', space=vmem, size = 0x2000, scoped, tag = 'output window, operand 0']
    #allocation3 [shape = 's32[2]{0}', space=sflag, size = 0x8, scoped, tag = 'scoped memory for tpu_custom_call.1']
    %8 = vsyncpa [#allocation3], 0
    %s9 = scalar_lea.sflag [#allocation3], 1
    %10 = vsyncpa %s9, 0
    loop: start=0, step=1, limit=4
    $region2: #{tpu_custom_call.1} parent=1 // loop_pre_header
      _
    $region3: #{tpu_custom_call.1} parent=1 // loop_header
      %s12 = sphi 0, %s16
      %p13 = scmp.ge.s32.totalorder %s12, 4
      %s19 = sphi 0, %s31
      %s20 = sphi 0, %s27
      %s21 = sphi 0, %s19
      %s22 = sphi 0, %s20
      %s23 = sphi 0, %s21
      %s24 = sphi 0, %s22
      %s36 = sphi 0, %s38
      %s39 = sphi 0, %s36
      %s40 = sphi 0, %s39
      %s56 = sphi 0, %s40
      %s62 = sphi 0, %s64
      %s65 = sphi 0, %s62
      %s66 = sphi 0, %s65
      %s82 = sphi 0, %s66
      %s86 = sphi 0, %s86
      %s88 = sphi 0, %s86
      %s89 = sphi 0, %s88
      %s103 = sphi 0, %s89
      %s111 = sphi 0, %s113
      %s114 = sphi 0, %s111
      %s115 = sphi 0, %s114
      %s131 = sphi 0, %s115
    $region4: #{tpu_custom_call.1} parent=1 // loop_header_branch
      %15 = sbr.rel (%p13) target = $region8
    $region5: #{tpu_custom_call.1} parent=1 // loop_body
      %s17 = ssub.s32 %s12, 1
      %s18 = ssub.s32 %s12, 2
      %s25 = sadd.s32 1, %s20
      %p26 = scmp.ge.s32.totalorder %s25, 1
      %s27 = scalar_select %p26, 0, %s25
      %s28 = sadd.s32 1, %s19
      %s29 = scalar_select %p26, %s28, %s19
      %p30 = scmp.ge.s32.totalorder %s29, 2
      %s31 = scalar_select %p30, 0, %s29
      %s32 = ssub.s32 %s19, %s31
      %s33 = ssub.s32 %s20, %s27
      %s34 = sor.u32 %s32, %s33
      %p35 = scmp.eq.s32.totalorder %s34, 0
      %s37 = sadd.s32 %s36, 1
      %s38 = scalar_select %p35, %s36, %s37
      %p41 = pneg %p35
      %p42 = scmp.eq.s32.totalorder %s12, 1
      %p43 = por %p41, %p42
      %p44 = scmp.ne.s32.totalorder %s36, %s39
      %p45 = scmp.eq.s32.totalorder %s12, 0
      %p46 = por %p44, %p45
      %p47 = scmp.ne.s32.totalorder %s36, %s39
      %p48 = scmp.eq.s32.totalorder %s17, 1
      %p49 = por %p47, %p48
      %p50 = scmp.ne.s32.totalorder %s39, %s40
      %p51 = scmp.eq.s32.totalorder %s17, 0
      %p52 = por %p50, %p51
      %p53 = scmp.ne.s32.totalorder %s39, %s40
      %p54 = scmp.eq.s32.totalorder %s18, 1
      %p55 = por %p53, %p54
      %p57 = scmp.ne.s32.totalorder %s40, %s56
      %p58 = scmp.eq.s32.totalorder %s18, 0
      %p59 = por %p57, %p58
      %s60 = ssub.s32 %s19, %s31
      %p61 = scmp.eq.s32.totalorder %s60, 0
      %s63 = sadd.s32 %s62, 1
      %s64 = scalar_select %p61, %s62, %s63
      %p67 = pneg %p61
      %p68 = scmp.eq.s32.totalorder %s12, 1
      %p69 = por %p67, %p68
      %p70 = scmp.ne.s32.totalorder %s62, %s65
      %p71 = scmp.eq.s32.totalorder %s12, 0
      %p72 = por %p70, %p71
      %p73 = scmp.ne.s32.totalorder %s62, %s65
      %p74 = scmp.eq.s32.totalorder %s17, 1
      %p75 = por %p73, %p74
      %p76 = scmp.ne.s32.totalorder %s65, %s66
      %p77 = scmp.eq.s32.totalorder %s17, 0
      %p78 = por %p76, %p77
      %p79 = scmp.ne.s32.totalorder %s65, %s66
      %p80 = scmp.eq.s32.totalorder %s18, 1
      %p81 = por %p79, %p80
      %p83 = scmp.ne.s32.totalorder %s66, %s82
      %p84 = scmp.eq.s32.totalorder %s18, 0
      %p85 = por %p83, %p84
      %s87 = sadd.s32 %s86, 1
      %p90 = scmp.eq.s32.totalorder %s12, 1
      %p91 = scmp.ne.s32.totalorder %s86, %s88
      %p92 = scmp.eq.s32.totalorder %s12, 0
      %p93 = por %p91, %p92
      %p94 = scmp.ne.s32.totalorder %s86, %s88
      %p95 = scmp.eq.s32.totalorder %s17, 1
      %p96 = por %p94, %p95
      %p97 = scmp.ne.s32.totalorder %s88, %s89
      %p98 = scmp.eq.s32.totalorder %s17, 0
      %p99 = por %p97, %p98
      %p100 = scmp.ne.s32.totalorder %s88, %s89
      %p101 = scmp.eq.s32.totalorder %s18, 1
      %p102 = por %p100, %p101
      %p104 = scmp.ne.s32.totalorder %s89, %s103
      %p105 = scmp.eq.s32.totalorder %s18, 0
      %p106 = por %p104, %p105
      %s107 = ssub.s32 %s19, %s31
      %s108 = ssub.s32 %s20, %s27
      %s109 = sor.u32 %s107, %s108
      %p110 = scmp.eq.s32.totalorder %s109, 0
      %s112 = sadd.s32 %s111, 1
      %s113 = scalar_select %p110, %s111, %s112
      %p116 = pneg %p110
      %p117 = scmp.eq.s32.totalorder %s12, 1
      %p118 = por %p116, %p117
      %p119 = scmp.ne.s32.totalorder %s111, %s114
      %p120 = scmp.eq.s32.totalorder %s12, 0
      %p121 = por %p119, %p120
      %p122 = scmp.ne.s32.totalorder %s111, %s114
      %p123 = scmp.eq.s32.totalorder %s17, 1
      %p124 = por %p122, %p123
      %p125 = scmp.ne.s32.totalorder %s114, %s115
      %p126 = scmp.eq.s32.totalorder %s17, 0
      %p127 = por %p125, %p126
      %p128 = scmp.ne.s32.totalorder %s114, %s115
      %p129 = scmp.eq.s32.totalorder %s18, 1
      %p130 = por %p128, %p129
      %p132 = scmp.ne.s32.totalorder %s115, %s131
      %p133 = scmp.eq.s32.totalorder %s18, 0
      %p134 = por %p132, %p133
      %p135 = scmp.le.s32.totalorder 1, %s12
      %p136 = scmp.lt.s32.totalorder %s12, 3
      %p137 = pnand %p135, %p136
      %p138 = pneg %p137
      // Predicated region
      $region9: #{tpu_custom_call.1} parent=5 // pred_check
        _
      $region10: #{tpu_custom_call.1} parent=5 // pred_check_branch
        %140 = sbr.rel (%p137) target = $region12
      $region11: #{tpu_custom_call.1} parent=5 // pred_region
        %s141 = ssub.s32 %s12, 1
        // Predicated region
        $region13: #{tpu_custom_call.1} parent=11 // pred_check
          %p142 = pneg %p99
        $region14: #{tpu_custom_call.1} parent=11 // pred_check_branch
          %144 = sbr.rel (%p142) target = $region16
        $region15: #{tpu_custom_call.1} parent=11 // pred_region
          _
        $region16: #{tpu_custom_call.1} parent=11 // pred_fallthru
          _
      $region12: #{tpu_custom_call.1} parent=5 // pred_fallthru
        _
      %p145 = scmp.lt.s32.totalorder %s12, 2
      // Predicated region
      $region17: #{tpu_custom_call.1} parent=5 // pred_check
        %p146 = pneg %p145
      $region18: #{tpu_custom_call.1} parent=5 // pred_check_branch
        %148 = sbr.rel (%p146) target = $region20
      $region19: #{tpu_custom_call.1} parent=5 // pred_region
        // Predicated region
        $region21: #{tpu_custom_call.1} parent=19 // pred_check
          %p149 = pneg %p46
        $region22: #{tpu_custom_call.1} parent=19 // pred_check_branch
          %151 = sbr.rel (%p149) target = $region24
        $region23: #{tpu_custom_call.1} parent=19 // pred_region
          %s152 = smul.u32 2, %s20
          %p153 = scmp.lt.s32.totalorder %s19, 1
          %s154 = scalar_select %p153, %s19, 1
          %p155 = scmp.lt.s32.totalorder %s152, 1
          %s156 = scalar_select %p155, %s152, 1
          %s157 = smul.addr %s154, 10
          %s158 = sadd.s32 %s156, %s157
          %s159 = smul.addr %s158, 8
          %s160 = scalar_lea.vmem %s0, %s159
          %s161 = smul.u32 2, %s20
        $region24: #{tpu_custom_call.1} parent=19 // pred_fallthru
          _
        // Predicated region
        $region25: #{tpu_custom_call.1} parent=19 // pred_check
          %p162 = pneg %p72
        $region26: #{tpu_custom_call.1} parent=19 // pred_check_branch
          %164 = sbr.rel (%p162) target = $region28
        $region27: #{tpu_custom_call.1} parent=19 // pred_region
          %p165 = scmp.lt.s32.totalorder %s19, 1
          %s166 = scalar_select %p165, %s19, 1
          %s167 = smul.addr %s166, 4
          %s168 = scalar_lea.vmem %s1, %s167
        $region28: #{tpu_custom_call.1} parent=19 // pred_fallthru
          _
      $region20: #{tpu_custom_call.1} parent=5 // pred_fallthru
        _
      %p169 = scmp.le.s32.totalorder 1, %s12
      %p170 = scmp.lt.s32.totalorder %s12, 3
      %p171 = pnand %p169, %p170
      %p172 = pneg %p171
      // Predicated region
      $region29: #{tpu_custom_call.1} parent=5 // pred_check
        _
      $region30: #{tpu_custom_call.1} parent=5 // pred_check_branch
        %174 = sbr.rel (%p171) target = $region32
      $region31: #{tpu_custom_call.1} parent=5 // pred_region
        %s175 = ssub.s32 %s12, 1
        %s176 = smul.u32 2, %s22
        %p177 = scmp.lt.s32.totalorder %s21, 1
        %s178 = scalar_select %p177, %s21, 1
        %p179 = scmp.lt.s32.totalorder %s176, 1
        %s180 = scalar_select %p179, %s176, 1
        %s181 = smul.addr %s178, 10
        %s182 = sadd.s32 %s180, %s181
        %s183 = smul.addr %s182, 8
        %s184 = scalar_lea.vmem %s0, %s183
        %p185 = pneg %p52
        %p186 = pneg %p49
        %p187 = scmp.lt.s32.totalorder %s21, 1
        %s188 = scalar_select %p187, %s21, 1
        %s189 = smul.addr %s188, 4
        %s190 = scalar_lea.vmem %s1, %s189
        %p191 = pneg %p78
        %p192 = pneg %p75
        %p193 = pneg %p99
        %p194 = pneg %p96
        %p195 = pneg %p127
        %p196 = pneg %p124
        %s197 = sand.u32 %s114, 1
        %s198 = scalar_lea.sflag [#allocation3], %s197
        %s199 = sand.u32 %s114, 1
        %s200 = smul.addr %s199, 8
        %s201 = scalar_lea.vmem [#allocation2], %s200
        %s202 = smul.u32 2, %s22
        %p203 = scmp.lt.s32.totalorder %s21, 1
        %s204 = scalar_select %p203, %s21, 1
        %p205 = scmp.lt.s32.totalorder %s202, 1
        %s206 = scalar_select %p205, %s202, 1
        %s207 = smul.addr %s204, 10
        %s208 = sadd.s32 %s206, %s207
        %s209 = smul.addr %s208, 8
        %s210 = scalar_lea.vmem %s0, %s209
        %s211 = smul.u32 2, %s22
        %p212 = scmp.lt.s32.totalorder %s21, 1
        %s213 = scalar_select %p212, %s21, 1
        %s214 = smul.addr %s213, 4
        %s215 = scalar_lea.vmem %s1, %s214
        %s216 = smul.u32 2, %s22
        %v217 = vld [vmem:[%s215] sm:$0xf]
        %v218 = vld [vmem:[%s210] sm:$0xff]
        %v219 = vld [vmem:[%s210 + $0x8] sm:$0xff]
        %v220 = vld [vmem:[%s210 + $0x10] sm:$0xff]
        %v221 = vld [vmem:[%s210 + $0x18] sm:$0xff]
        %v222 = vld [vmem:[%s210 + $0x20] sm:$0xff]
        %v223 = vld [vmem:[%s210 + $0x28] sm:$0xff]
        %v224 = vld [vmem:[%s210 + $0x30] sm:$0xff]
        %v225 = vld [vmem:[%s210 + $0x38] sm:$0xff]
        %v226 = vld [vmem:[%s210 + $0x40] sm:$0xf]
        %v227 = vld [vmem:[%s210 + $0x48] sm:$0xf]
        %v228 = vld [vmem:[%s2] sm:$0xf]
        %230 = vset.pattern.permute.xlu0 0
        %231 = vperm.xlu0 %230, %v228
        %v232 = vpop.permute.xlu0 %231
        %vm234 = vcmask 293888
        %v236 = vsel %vm234, %v217, 0
        %vm238 = vcmask 1043456
        %v240 = vsel %vm238, %v226, 0
        %v243 = vsel %vm238, %v227, 0
        %245 = vmatprep.subr.mxu0 %v219
        %246 = vmatpush1.msra.mxu0 %v218
        %247 = vmatprep.subr.mxu0 %v221
        %248 = vmatpush1.msra.mxu0 %v220
        %249 = vmatprep.subr.mxu0 %v223
        %250 = vmatpush1.msra.mxu0 %v222
        %251 = vmatprep.subr.mxu0 %v225
        %252 = vmatpush1.msra.mxu0 %v224
        %253 = vmatprep.subr.mxu0 %v243
        %254 = vmatpush1.msra.mxu0 %v240
        %255 = vmatprep.subr.mxu0 0.0
        %256 = vmatpush1.msra.mxu0 0.0
        %257 = vmatprep.subr.mxu0 0.0
        %258 = vmatpush1.msra.mxu0 0.0
        %259 = vmatprep.subr.mxu0 0.0
        %260 = vmatpush1.msra.mxu0 0.0
        %261 = vmatprep.subr.mxu0 0.0
        %262 = vmatpush1.msra.mxu0 0.0
        %263 = vmatprep.subr.mxu0 0.0
        %264 = vmatpush1.msra.mxu0 0.0
        %265 = vmatprep.subr.mxu0 0.0
        %266 = vmatpush1.msra.mxu0 0.0
        %267 = vmatprep.subr.mxu0 0.0
        %268 = vmatpush1.msra.mxu0 0.0
        %269 = vmatprep.subr.mxu0 0.0
        %270 = vmatpush1.msra.mxu0 0.0
        %271 = vmatprep.subr.mxu0 0.0
        %272 = vmatpush1.msra.mxu0 0.0
        %273 = vmatprep.subr.mxu0 0.0
        %274 = vmatpush1.msra.mxu0 0.0
        %275 = vmatprep.subr.mxu0 0.0
        %276 = vmatpush1.msra.mxu0 0.0
        %277 = vmatprep.subr.mxu0 0.0
        %278 = vmatpush1.msra.mxu0 0.0
        %279 = vmatprep.subr.mxu0 0.0
        %280 = vmatpush1.msra.mxu0 0.0
        %281 = vmatprep.subr.mxu0 0.0
        %282 = vmatpush1.msra.mxu0 0.0
        %283 = vmatprep.subr.mxu0 0.0
        %284 = vmatpush1.msra.mxu0 0.0
        %285 = vmatprep.subr.mxu0 0.0
        %286 = vmatpush1.msra.mxu0 0.0
        %287 = vmatprep.subr.mxu0 0.0
        %288 = vmatpush1.msra.mxu0 0.0
        %289 = vmatprep.subr.mxu0 0.0
        %290 = vmatpush1.msra.mxu0 0.0
        %291 = vmatprep.subr.mxu0 0.0
        %292 = vmatpush1.msra.mxu0 0.0
        %293 = vmatprep.subr.mxu0 0.0
        %294 = vmatpush1.msra.mxu0 0.0
        %295 = vmatprep.subr.mxu0 0.0
        %296 = vmatpush1.msra.mxu0 0.0
        %297 = vmatprep.subr.mxu0 0.0
        %298 = vmatpush1.msra.mxu0 0.0
        %299 = vmatprep.subr.mxu0 0.0
        %300 = vmatpush1.msra.mxu0 0.0
        %301 = vmatprep.subr.mxu0 0.0
        %302 = vmatpush1.msra.mxu0 0.0
        %303 = vmatprep.subr.mxu0 0.0
        %304 = vmatpush1.msra.mxu0 0.0
        %305 = vmatprep.subr.mxu0 0.0
        %306 = vmatpush1.msra.mxu0 0.0
        %307 = vmatprep.subr.mxu0 0.0
        %308 = vmatpush1.msra.mxu0 0.0
        %309 = vmatprep.mubr.f32.mxu0 0.0
        %310 = vmatmul.mubr.f32.gmra.mrb[0].mxu0 %v236
        %v311 = vpop.f32.mrb[0].mxu0
        %v312 = vadd.f32 %v232, %v311
        %v313 = vpop.f32.mrb[0].mxu0
        %v314 = vadd.f32 %v232, %v313
        %315 = vdwg.mxu0
        %vm316 = vcmp.ge.f32.partialorder %v312, 0.0
        %vm317 = vcmp.ge.f32.partialorder %v314, 0.0
        %v318 = vmul.f32 %v312, 0.01
        %v319 = vmul.f32 %v314, 0.01
        %v320 = vsel %vm316, %v312, %v318
        %v321 = vsel %vm317, %v314, %v319
        %v324 = vcombine.low %v320, %v321
        %326 = vst [vmem:[%s201] sm:$0xff] %v324
        %s327 = sand.u32 %s114, 1
        %s328 = scalar_lea.sflag [#allocation3], %s327
        %s329 = sand.u32 %s114, 1
        %s330 = smul.addr %s329, 8
        %s331 = scalar_lea.vmem [#allocation2], %s330
        // Predicated region
        $region33: #{tpu_custom_call.1} parent=31 // pred_check
          %p332 = pneg %p124
        $region34: #{tpu_custom_call.1} parent=31 // pred_check_branch
          %334 = sbr.rel (%p332) target = $region36
        $region35: #{tpu_custom_call.1} parent=31 // pred_region
          %s335 = smul.u32 2, %s22
          %s337 = ssub.s32 128, 128
          %338 = vsyncadd %s328, %s337
          %s339 = smul.addr %s21, 2
          %s340 = sadd.s32 %s335, %s339
          %s341 = smul.addr %s340, 64
          %s342 = scalar_lea.hbm %s3, %s341
          %s344 = sshll.u32 %s331, 4
          %s345 = int_to_ptr.vmem [resolvable:$true] %s344
          %347 = dma.vmem_to_hbm [thread:$0]  %s345, 128, %s342, %s328
        $region36: #{tpu_custom_call.1} parent=31 // pred_fallthru
          _
      $region32: #{tpu_custom_call.1} parent=5 // pred_fallthru
        _
      %p348 = scmp.le.s32.totalorder 2, %s12
      // Predicated region
      $region37: #{tpu_custom_call.1} parent=5 // pred_check
        %p349 = pneg %p348
      $region38: #{tpu_custom_call.1} parent=5 // pred_check_branch
        %351 = sbr.rel (%p349) target = $region40
      $region39: #{tpu_custom_call.1} parent=5 // pred_region
        %s352 = ssub.s32 %s12, 2
        // Predicated region
        $region41: #{tpu_custom_call.1} parent=39 // pred_check
          %p353 = pneg %p130
        $region42: #{tpu_custom_call.1} parent=39 // pred_check_branch
          %355 = sbr.rel (%p353) target = $region44
        $region43: #{tpu_custom_call.1} parent=39 // pred_region
          %s356 = sand.u32 %s115, 1
          %s357 = scalar_lea.sflag [#allocation3], %s356
          %s358 = sand.u32 %s115, 1
          %s359 = smul.addr %s358, 8
          %s360 = scalar_lea.vmem [#allocation2], %s359
          %361 = dma.done %s357, 128
        $region44: #{tpu_custom_call.1} parent=39 // pred_fallthru
          _
      $region40: #{tpu_custom_call.1} parent=5 // pred_fallthru
        _
    $region6: #{tpu_custom_call.1} parent=1 // loop_footer
      %s16 = sadd.s32 1, %s12
    $region7: #{tpu_custom_call.1} parent=1 // loop_footer_branch
      %11 = sbr.rel target = $region3
    $region8: #{tpu_custom_call.1} parent=1 // loop_exit
      _
    %362 = vsyncpa [#allocation3], 1
    %s363 = scalar_lea.sflag [#allocation3], 1
    %364 = vsyncpa %s363, 1

</llo_original>
